<compile_context>
chip_gen: v5e
topology: v5e:2x2
jax: 0.10.0
libtpu: 0.0.40
codegen_flags: <defaults>
</compile_context>

<pallas_src>
import functools

import jax
import jax.numpy as jnp
from jax.experimental import pallas as pl
from jax.experimental.pallas import tpu as pltpu

_LANE = 128
_SUBLANE = 8


def _round_up(x, m):
    return ((x + m - 1) // m) * m


def _device_kind():
    try:
        return jax.devices()[0].device_kind.lower()
    except Exception:
        return ""


def _vmem_capacity_bytes():
    try:
        return int(pltpu.get_tpu_info().vmem_capacity_bytes)
    except Exception:
        # Conservative default == v7x (64 MiB per TensorCore).
        return 64 << 20


def _has_bf16_valu(kind):
    # v5e and older have no bf16 VALU -> keep the ReLU in f32 there (identical math).
    return not any(t in kind for t in ("v2", "v3", "v4", "v5 lite", "v5e", "v5lite"))


def _choose_tile_m(M, cap):
    """Pick an M tile: <= cap, sublane/lane friendly, >= 2 grid steps when M >= 256."""
    if M < 256:
        # One block covering all rows; a ragged tail (M % 8 != 0) is masked by Pallas.
        return M if M % _SUBLANE == 0 else _round_up(M, _SUBLANE)
    tm = min(cap, _round_up(pl.cdiv(M, 2), _LANE))
    return max(_LANE, (tm // _LANE) * _LANE)


def _mlp_kernel(num_layers, compute_dtype, relu_in_compute_dtype, x_ref, *refs):
    w_refs = refs[:num_layers]
    o_ref = refs[num_layers]

    # One cheap VPU cast per tile; matmuls then run the bf16 MXU path with f32 acc.
    h = x_ref[...].astype(compute_dtype)
    for l in range(num_layers):
        h = jnp.dot(h, w_refs[l][...], preferred_element_type=jnp.float32)
        if l != num_layers - 1:
            if relu_in_compute_dtype:
                h = jnp.maximum(h.astype(compute_dtype), 0)      # bf16 VPU (v6e/v7x)
            else:
                h = jnp.maximum(h, 0.0).astype(compute_dtype)    # f32 VPU (v5e)
    o_ref[...] = h.astype(o_ref.dtype)


def _mlp_xla(x2, w_list, num_layers, compute_dtype, out_dtype):
    # Plain-XLA fallback, used only when the all-weights-resident kernel would
    # not fit in device VMEM.
    # TODO(synk): replace with a per-layer K/N-tiled Pallas pipeline (extra grid
    # axis / pltpu.emit_pipeline over the hidden dim; N tiles multiple of 256 on
    # v6e/v7x) for very large hidden dims instead of leaving XLA to do it.
    h = x2.astype(compute_dtype)
    for l, w in enumerate(w_list):
        h = jnp.dot(h, w, preferred_element_type=jnp.float32)
        if l != num_layers - 1:
            h = jnp.maximum(h, 0.0).astype(compute_dtype)
    return h.astype(out_dtype)


def mlp_pallas(x, weights, *, compute_dtype=jnp.bfloat16, tile_m=None):
    """Fused bias-free MLP.  x: (..., dim_in); weights[l]: (out_f, in_f) (PyTorch layout)."""
    num_layers = len(weights)
    dim_in = weights[0].shape[1]
    dim_out = weights[-1].shape[0]
    out_dtype = x.dtype
    if compute_dtype is None:        # opt-out: keep f32 operands end-to-end
        compute_dtype = x.dtype

    orig_shape = x.shape
    x2 = x.reshape(-1, dim_in)
    M = x2.shape[0]

    # ---- per-layer feature widths; pad only *hidden* widths to lane multiples ----
    feat = [dim_in] + [w.shape[0] for w in weights]
    feat_p = list(feat)
    for l in range(1, num_layers):                 # hidden layers only
        feat_p[l] = _round_up(feat[l], _LANE)

    # One-time weight prep: transpose to (in_f, out_f), cast to compute dtype,
    # zero-pad hidden widths (exact-zero rows/cols -> results unchanged).
    w_list = []
    for l, w in enumerate(weights):
        wt = jnp.transpose(w).astype(compute_dtype)
        wt = jnp.pad(wt, ((0, feat_p[l] - wt.shape[0]),
                          (0, feat_p[l + 1] - wt.shape[1])))
        w_list.append(wt)

    # ---- generation-aware knobs ---------------------------------------------------
    kind = _device_kind()
    vmem_cap = _vmem_capacity_bytes()
    cap = tile_m if tile_m is not None else (512 if "v7" in kind else 1024)
    tm = _choose_tile_m(M, cap)
    grid = (pl.cdiv(M, tm),)                       # ragged last block is masked

    # ---- VMEM budget: double-buffered x/out, resident weights, f32 intermediates --
    c_item = jnp.dtype(compute_dtype).itemsize
    w_bytes = sum(int(w.size) * w.dtype.itemsize for w in w_list)
    act_bytes = 2 * tm * (dim_in * jnp.dtype(x.dtype).itemsize
                          + dim_out * jnp.dtype(out_dtype).itemsize)
    inter_bytes = tm * max(feat_p) * (4 + c_item)
    need = 2 * w_bytes + act_bytes + inter_bytes
    if need > int(0.7 * vmem_cap):
        # VMEM-residency guard (hits ~2x earlier on v7x's 64 MiB than v5e/v6e).
        out = _mlp_xla(x2, w_list, num_layers, compute_dtype, out_dtype)
        return out.reshape(*orig_shape[:-1], dim_out)
    vmem_limit = min(max(int(need * 1.5) + (8 << 20), 16 << 20),
                     int(0.9 * vmem_cap))

    x_spec = pl.BlockSpec((tm, dim_in), lambda i: (i, 0))
    out_spec = pl.BlockSpec((tm, dim_out), lambda i: (i, 0))
    # Full-array weight blocks with a constant index_map: loaded once, no re-DMA.
    w_specs = [pl.BlockSpec(w.shape, lambda i: (0, 0)) for w in w_list]

    kernel = functools.partial(_mlp_kernel, num_layers, compute_dtype,
                               _has_bf16_valu(kind))

    out = pl.pallas_call(
        kernel,
        out_shape=jax.ShapeDtypeStruct((M, dim_out), out_dtype),
        grid_spec=pltpu.PrefetchScalarGridSpec(
            num_scalar_prefetch=0,
            grid=grid,
            in_specs=[x_spec] + w_specs,
            out_specs=out_spec,
        ),
        compiler_params=pltpu.CompilerParams(
            dimension_semantics=("parallel",),
            vmem_limit_bytes=vmem_limit,
        ),
    )(x2, *w_list)

    return out.reshape(*orig_shape[:-1], dim_out)


def mlp_reference(x, weights, compute_dtype=jnp.bfloat16):
    """Mirror of the kernel's numerics (same operand dtype, f32 accumulation)."""
    dim_out = weights[-1].shape[0]
    h = x.reshape(-1, x.shape[-1]).astype(compute_dtype)
    for l, w in enumerate(weights):
        h = jnp.dot(h, jnp.transpose(w).astype(compute_dtype),
                    preferred_element_type=jnp.float32)
        if l != len(weights) - 1:
            h = jnp.maximum(h, 0.0).astype(compute_dtype)
    return h.astype(x.dtype).reshape(*x.shape[:-1], dim_out)


if __name__ == "__main__":
    # Module config consistent with MLP(dim_in, dim_out, dim_hidden, num_layers).
    dim_in, dim_out, dim_hidden, num_layers = 32, 16, 64, 3

    key = jax.random.PRNGKey(0)
    keys = jax.random.split(key, num_layers + 1)

    # Deterministic parameter init (Kaiming-uniform-like bound, torch Linear default).
    weights = []
    for l in range(num_layers):
        in_f = dim_in if l == 0 else dim_hidden
        out_f = dim_out if l == num_layers - 1 else dim_hidden
        bound = 1.0 / (in_f ** 0.5)
        weights.append(jax.random.uniform(keys[l], (out_f, in_f), jnp.float32,
                                          -bound, bound))

    # Example input: (batch=2, seq=64, dim_in=32)
    x = jax.random.normal(keys[-1], (2, 64, dim_in), jnp.float32)

    y = jax.block_until_ready(mlp_pallas(x, weights))
    y_ref = mlp_reference(x, weights)

    assert y.shape == (2, 64, dim_out), y.shape
    err = float(jnp.max(jnp.abs(y.astype(jnp.float32) - y_ref.astype(jnp.float32))))
    # bf16 operands with f32 accumulation; kernel and reference share the rounding,
    # so the residual is only accumulation-order noise.
    assert err < 1e-2, err

    print("KERNEL_OK")
</pallas_src>

<mosaic_0001>
module attributes {stable_mosaic.version = 11 : i64} {
  func.func @_mlp_kernel(%arg0: i32, %arg1: memref<128x32xf32, #tpu.memory_space<vmem>>, %arg2: memref<32x128xbf16, #tpu.memory_space<vmem>>, %arg3: memref<128x128xbf16, #tpu.memory_space<vmem>>, %arg4: memref<128x16xbf16, #tpu.memory_space<vmem>>, %arg5: memref<128x16xf32, #tpu.memory_space<vmem>>) attributes {dimension_semantics = [#tpu.dimension_semantics<parallel>], iteration_bounds = array<i64: 1>, scalar_prefetch = 0 : i64, scratch_operands = 0 : i64, tpu.core_type = #tpu.core_type<tc>, window_params = [{transform_indices = @transform_0, window_bounds = array<i64: 128, 32>}, {pipeline_mode = #tpu.pipeline_mode<synchronous>, transform_indices = @transform_1, window_bounds = array<i64: 32, 128>}, {pipeline_mode = #tpu.pipeline_mode<synchronous>, transform_indices = @transform_2, window_bounds = array<i64: 128, 128>}, {pipeline_mode = #tpu.pipeline_mode<synchronous>, transform_indices = @transform_3, window_bounds = array<i64: 128, 16>}, {transform_indices = @transform_4, window_bounds = array<i64: 128, 16>}]} {
    %c0 = arith.constant 0 : index
    %c0_0 = arith.constant 0 : index
    %0 = vector.load %arg1[%c0, %c0_0] : memref<128x32xf32, #tpu.memory_space<vmem>>, vector<128x32xf32>
    %1 = arith.truncf %0 : vector<128x32xf32> to vector<128x32xbf16>
    %c0_1 = arith.constant 0 : index
    %c0_2 = arith.constant 0 : index
    %2 = vector.load %arg2[%c0_1, %c0_2] : memref<32x128xbf16, #tpu.memory_space<vmem>>, vector<32x128xbf16>
    %cst = arith.constant dense<0.000000e+00> : vector<128x128xf32>
    %3 = tpu.matmul %1, %2, %cst {dimension_numbers = #tpu.dot_dimension_numbers<[1], [0], [0], [1], [0, 0, 1, 1], [], []>} : vector<128x32xbf16>, vector<32x128xbf16>, vector<128x128xf32> -> vector<128x128xf32>
    %4 = arith.truncf %3 : vector<128x128xf32> to vector<128x128xbf16>
    %cst_3 = arith.constant 0.000000e+00 : bf16
    %5 = vector.broadcast %cst_3 : bf16 to vector<128x128xbf16>
    %6 = arith.maximumf %4, %5 : vector<128x128xbf16>
    %c0_4 = arith.constant 0 : index
    %c0_5 = arith.constant 0 : index
    %7 = vector.load %arg3[%c0_4, %c0_5] : memref<128x128xbf16, #tpu.memory_space<vmem>>, vector<128x128xbf16>
    %cst_6 = arith.constant dense<0.000000e+00> : vector<128x128xf32>
    %8 = tpu.matmul %6, %7, %cst_6 {dimension_numbers = #tpu.dot_dimension_numbers<[1], [0], [0], [1], [0, 0, 1, 1], [], []>} : vector<128x128xbf16>, vector<128x128xbf16>, vector<128x128xf32> -> vector<128x128xf32>
    %9 = arith.truncf %8 : vector<128x128xf32> to vector<128x128xbf16>
    %cst_7 = arith.constant 0.000000e+00 : bf16
    %10 = vector.broadcast %cst_7 : bf16 to vector<128x128xbf16>
    %11 = arith.maximumf %9, %10 : vector<128x128xbf16>
    %c0_8 = arith.constant 0 : index
    %c0_9 = arith.constant 0 : index
    %12 = vector.load %arg4[%c0_8, %c0_9] : memref<128x16xbf16, #tpu.memory_space<vmem>>, vector<128x16xbf16>
    %cst_10 = arith.constant dense<0.000000e+00> : vector<128x16xf32>
    %13 = tpu.matmul %11, %12, %cst_10 {dimension_numbers = #tpu.dot_dimension_numbers<[1], [0], [0], [1], [0, 0, 1, 1], [], []>} : vector<128x128xbf16>, vector<128x16xbf16>, vector<128x16xf32> -> vector<128x16xf32>
    %c0_11 = arith.constant 0 : index
    %c0_12 = arith.constant 0 : index
    %14 = vector.load %arg5[%c0_11, %c0_12] : memref<128x16xf32, #tpu.memory_space<vmem>>, vector<128x16xf32>
    tpu.vector_store %arg5[%c0_11, %c0_12], %13 {strides = array<i32>} : memref<128x16xf32, #tpu.memory_space<vmem>>, vector<128x16xf32>,
    return
  }
  func.func @transform_0(%arg0: i32) -> (i32, i32) {
    %c0_i32 = arith.constant 0 : i32
    %c0_i32_0 = arith.constant 0 : i32
    return %arg0, %c0_i32 : i32, i32
  }
  func.func @transform_1(%arg0: i32) -> (i32, i32) {
    %c0_i32 = arith.constant 0 : i32
    %c0_i32_0 = arith.constant 0 : i32
    %c0_i32_1 = arith.constant 0 : i32
    return %c0_i32, %c0_i32_0 : i32, i32
  }
  func.func @transform_2(%arg0: i32) -> (i32, i32) {
    %c0_i32 = arith.constant 0 : i32
    %c0_i32_0 = arith.constant 0 : i32
    %c0_i32_1 = arith.constant 0 : i32
    return %c0_i32, %c0_i32_0 : i32, i32
  }
  func.func @transform_3(%arg0: i32) -> (i32, i32) {
    %c0_i32 = arith.constant 0 : i32
    %c0_i32_0 = arith.constant 0 : i32
    %c0_i32_1 = arith.constant 0 : i32
    return %c0_i32, %c0_i32_0 : i32, i32
  }
  func.func @transform_4(%arg0: i32) -> (i32, i32) {
    %c0_i32 = arith.constant 0 : i32
    %c0_i32_0 = arith.constant 0 : i32
    return %arg0, %c0_i32 : i32, i32
  }
}

</mosaic_0001>

<llo_original>
// kernel: tpu_custom_call.1
$region0: #{tpu_custom_call.1}
  #allocation0 [shape = 'u32[]', space=smem, size = 0x4, offset = 0x4, fixed_abs, tag = 'smem constant byte address 0x4 - core index']
  #allocation1 [shape = 'u32[72,128]{1,0:T(1,128)}', space=vmem, size = 0x9000, scoped, tag = 'internal scratch']
  %s0 = inlined_call_operand.vmem [shape: f32[128,32], index: 0, kind: input, shape index: {}]
  %s1 = inlined_call_operand.vmem [shape: bf16[32,128], index: 1, kind: input, shape index: {}]
  %s2 = inlined_call_operand.vmem [shape: bf16[128,128], index: 2, kind: input, shape index: {}]
  %s3 = inlined_call_operand.vmem [shape: bf16[128,16], index: 3, kind: input, shape index: {}]
  %s4 = inlined_call_operand.vmem [shape: f32[128,16], index: 4, kind: output, shape index: {}]
  %s5 = sld [smem:[#allocation0]]
  $region26: #{tpu_custom_call.1} parent=0
    _
  %s7 = ssub.s32 1, %s5
  %s8 = scalar_select 0, %s7, %s5
  // Predicated region
  $region2: #{tpu_custom_call.1} parent=0 // pred_check
    _
  $region3: #{tpu_custom_call.1} parent=0 // pred_check_branch
    %10 = sbr.rel (0) target = $region5
  $region4: #{tpu_custom_call.1} parent=0 // pred_region
    _
  $region5: #{tpu_custom_call.1} parent=0 // pred_fallthru
    _
  // Predicated region
  $region6: #{tpu_custom_call.1} parent=0 // pred_check
    _
  $region7: #{tpu_custom_call.1} parent=0 // pred_check_branch
    %12 = sbr.rel (0) target = $region9
  $region8: #{tpu_custom_call.1} parent=0 // pred_region
    _
  $region9: #{tpu_custom_call.1} parent=0 // pred_fallthru
    _
  // Predicated region
  $region10: #{tpu_custom_call.1} parent=0 // pred_check
    _
  $region11: #{tpu_custom_call.1} parent=0 // pred_check_branch
    %14 = sbr.rel (0) target = $region13
  $region12: #{tpu_custom_call.1} parent=0 // pred_region
    _
  $region13: #{tpu_custom_call.1} parent=0 // pred_fallthru
    _
  // Predicated region
  $region14: #{tpu_custom_call.1} parent=0 // pred_check
    _
  $region15: #{tpu_custom_call.1} parent=0 // pred_check_branch
    %16 = sbr.rel (0) target = $region17
  $region16: #{tpu_custom_call.1} parent=0 // pred_region
    _
  $region17: #{tpu_custom_call.1} parent=0 // pred_fallthru
    _
  %v18 = vld [vmem:[%s0] sm:$0xff]
  %v19 = vld [vmem:[%s0 + $0x8] sm:$0xff]
  %v20 = vld [vmem:[%s0 + $0x10] sm:$0xff]
  %v21 = vld [vmem:[%s0 + $0x18] sm:$0xff]
  %v22 = vld [vmem:[%s0 + $0x20] sm:$0xff]
  %v23 = vld [vmem:[%s0 + $0x28] sm:$0xff]
  %v24 = vld [vmem:[%s0 + $0x30] sm:$0xff]
  %v25 = vld [vmem:[%s0 + $0x38] sm:$0xff]
  %v26 = vld [vmem:[%s0 + $0x40] sm:$0xff]
  %v27 = vld [vmem:[%s0 + $0x48] sm:$0xff]
  %v28 = vld [vmem:[%s0 + $0x50] sm:$0xff]
  %v29 = vld [vmem:[%s0 + $0x58] sm:$0xff]
  %v30 = vld [vmem:[%s0 + $0x60] sm:$0xff]
  %v31 = vld [vmem:[%s0 + $0x68] sm:$0xff]
  %v32 = vld [vmem:[%s0 + $0x70] sm:$0xff]
  %v33 = vld [vmem:[%s0 + $0x78] sm:$0xff]
  %v34 = vpack.c.bf16 %v19, %v18
  %v35 = vpack.c.bf16 %v21, %v20
  %v36 = vpack.c.bf16 %v23, %v22
  %v37 = vpack.c.bf16 %v25, %v24
  %v38 = vpack.c.bf16 %v27, %v26
  %v39 = vpack.c.bf16 %v29, %v28
  %v40 = vpack.c.bf16 %v31, %v30
  %v41 = vpack.c.bf16 %v33, %v32
  %v42 = vld [vmem:[%s1] sm:$0xf]
  %v43 = vld [vmem:[%s1 + $0x4] sm:$0xf]
  %v44 = vld [vmem:[%s1 + $0x8] sm:$0xf]
  %v45 = vld [vmem:[%s1 + $0xc] sm:$0xf]
  %v50 = vunpack.c.l.b16 %v42
  %v51 = vunpack.c.l.b16 %v43
  %v52 = vunpack.c.l.b16 %v44
  %v53 = vunpack.c.l.b16 %v45
  %v54 = vpack.c.b16 %v51, %v50
  %v55 = vpack.c.b16 %v53, %v52
  %vm58 = vcmask 261120
  %v60 = vsel %vm58, %v34, 0
  %v63 = vsel %vm58, %v35, 0
  %v66 = vsel %vm58, %v36, 0
  %v69 = vsel %vm58, %v37, 0
  %v72 = vsel %vm58, %v38, 0
  %v75 = vsel %vm58, %v39, 0
  %v78 = vsel %vm58, %v40, 0
  %v81 = vsel %vm58, %v41, 0
  %83 = vmatpush.bf16.msra.mxu0 0
  %84 = vmatpush.bf16.msra.mxu0 0
  %85 = vmatpush.bf16.msra.mxu0 0
  %86 = vmatpush.bf16.msra.mxu0 0
  %87 = vmatpush.bf16.msra.mxu0 0
  %88 = vmatpush.bf16.msra.mxu0 0
  %89 = vmatpush.bf16.msra.mxu0 %v55
  %90 = vmatpush.bf16.msra.mxu0 %v54
  %91 = vmatmul.bf16.gmra.mxu0 %v60
  %v92 = vpop.f32.mrf.mxu0
  %v93 = vadd.f32 0.0, %v92
  %v94 = vpop.f32.mrf.mxu0
  %v95 = vadd.f32 0.0, %v94
  %96 = vmatmul.bf16.gmra.mxu0 %v63
  %v97 = vpop.f32.mrf.mxu0
  %v98 = vadd.f32 0.0, %v97
  %v99 = vpop.f32.mrf.mxu0
  %v100 = vadd.f32 0.0, %v99
  %101 = vmatmul.bf16.gmra.mxu0 %v66
  %v102 = vpop.f32.mrf.mxu0
  %v103 = vadd.f32 0.0, %v102
  %v104 = vpop.f32.mrf.mxu0
  %v105 = vadd.f32 0.0, %v104
  %106 = vmatmul.bf16.gmra.mxu0 %v69
  %v107 = vpop.f32.mrf.mxu0
  %v108 = vadd.f32 0.0, %v107
  %v109 = vpop.f32.mrf.mxu0
  %v110 = vadd.f32 0.0, %v109
  %111 = vmatmul.bf16.gmra.mxu0 %v72
  %v112 = vpop.f32.mrf.mxu0
  %v113 = vadd.f32 0.0, %v112
  %v114 = vpop.f32.mrf.mxu0
  %v115 = vadd.f32 0.0, %v114
  %116 = vmatmul.bf16.gmra.mxu0 %v75
  %v117 = vpop.f32.mrf.mxu0
  %v118 = vadd.f32 0.0, %v117
  %v119 = vpop.f32.mrf.mxu0
  %v120 = vadd.f32 0.0, %v119
  %121 = vmatmul.bf16.gmra.mxu0 %v78
  %v122 = vpop.f32.mrf.mxu0
  %v123 = vadd.f32 0.0, %v122
  %v124 = vpop.f32.mrf.mxu0
  %v125 = vadd.f32 0.0, %v124
  %126 = vmatmul.bf16.gmra.mxu0 %v81
  %v127 = vpop.f32.mrf.mxu0
  %v128 = vadd.f32 0.0, %v127
  %v129 = vpop.f32.mrf.mxu0
  %v130 = vadd.f32 0.0, %v129
  %131 = vdwg.mxu0
  %v132 = vpack.c.bf16 %v93, %v93
  %v133 = vpack.c.bf16 %v95, %v95
  %v134 = vpack.c.bf16 %v98, %v98
  %v135 = vpack.c.bf16 %v100, %v100
  %v136 = vpack.c.bf16 %v103, %v103
  %v137 = vpack.c.bf16 %v105, %v105
  %v138 = vpack.c.bf16 %v108, %v108
  %v139 = vpack.c.bf16 %v110, %v110
  %v140 = vpack.c.bf16 %v113, %v113
  %v141 = vpack.c.bf16 %v115, %v115
  %v142 = vpack.c.bf16 %v118, %v118
  %v143 = vpack.c.bf16 %v120, %v120
  %v144 = vpack.c.bf16 %v123, %v123
  %v145 = vpack.c.bf16 %v125, %v125
  %v146 = vpack.c.bf16 %v128, %v128
  %v147 = vpack.c.bf16 %v130, %v130
  %v148 = vunpack.c.l.bf16 %v132
  %v149 = vunpack.c.l.bf16 %v133
  %v150 = vunpack.c.l.bf16 %v134
  %v151 = vunpack.c.l.bf16 %v135
  %v152 = vunpack.c.l.bf16 %v136
  %v153 = vunpack.c.l.bf16 %v137
  %v154 = vunpack.c.l.bf16 %v138
  %v155 = vunpack.c.l.bf16 %v139
  %v156 = vunpack.c.l.bf16 %v140
  %v157 = vunpack.c.l.bf16 %v141
  %v158 = vunpack.c.l.bf16 %v142
  %v159 = vunpack.c.l.bf16 %v143
  %v160 = vunpack.c.l.bf16 %v144
  %v161 = vunpack.c.l.bf16 %v145
  %v162 = vunpack.c.l.bf16 %v146
  %v163 = vunpack.c.l.bf16 %v147
  %v164 = vmax.f32 %v148, 0.0
  %v165 = vmax.f32 %v149, 0.0
  %v166 = vmax.f32 %v150, 0.0
  %v167 = vmax.f32 %v151, 0.0
  %v168 = vmax.f32 %v152, 0.0
  %v169 = vmax.f32 %v153, 0.0
  %v170 = vmax.f32 %v154, 0.0
  %v171 = vmax.f32 %v155, 0.0
  %v172 = vmax.f32 %v156, 0.0
  %v173 = vmax.f32 %v157, 0.0
  %v174 = vmax.f32 %v158, 0.0
  %v175 = vmax.f32 %v159, 0.0
  %v176 = vmax.f32 %v160, 0.0
  %v177 = vmax.f32 %v161, 0.0
  %v178 = vmax.f32 %v162, 0.0
  %v179 = vmax.f32 %v163, 0.0
  %v180 = vpack.c.bf16 %v165, %v164
  %v181 = vpack.c.bf16 %v167, %v166
  %v182 = vpack.c.bf16 %v169, %v168
  %v183 = vpack.c.bf16 %v171, %v170
  %v184 = vpack.c.bf16 %v173, %v172
  %v185 = vpack.c.bf16 %v175, %v174
  %v186 = vpack.c.bf16 %v177, %v176
  %v187 = vpack.c.bf16 %v179, %v178
  %v188 = vld [vmem:[%s2] sm:$0xf]
  %v189 = vld [vmem:[%s2 + $0x4] sm:$0xf]
  %v190 = vld [vmem:[%s2 + $0x8] sm:$0xf]
  %v191 = vld [vmem:[%s2 + $0xc] sm:$0xf]
  %v192 = vld [vmem:[%s2 + $0x10] sm:$0xf]
  %v193 = vld [vmem:[%s2 + $0x14] sm:$0xf]
  %v194 = vld [vmem:[%s2 + $0x18] sm:$0xf]
  %v195 = vld [vmem:[%s2 + $0x1c] sm:$0xf]
  %v196 = vld [vmem:[%s2 + $0x20] sm:$0xf]
  %v197 = vld [vmem:[%s2 + $0x24] sm:$0xf]
  %v198 = vld [vmem:[%s2 + $0x28] sm:$0xf]
  %v199 = vld [vmem:[%s2 + $0x2c] sm:$0xf]
  %v200 = vld [vmem:[%s2 + $0x30] sm:$0xf]
  %v201 = vld [vmem:[%s2 + $0x34] sm:$0xf]
  %v202 = vld [vmem:[%s2 + $0x38] sm:$0xf]
  %v203 = vld [vmem:[%s2 + $0x3c] sm:$0xf]
  %v220 = vunpack.c.l.b16 %v188
  %v221 = vunpack.c.l.b16 %v189
  %v222 = vunpack.c.l.b16 %v190
  %v223 = vunpack.c.l.b16 %v191
  %v224 = vunpack.c.l.b16 %v192
  %v225 = vunpack.c.l.b16 %v193
  %v226 = vunpack.c.l.b16 %v194
  %v227 = vunpack.c.l.b16 %v195
  %v228 = vunpack.c.l.b16 %v196
  %v229 = vunpack.c.l.b16 %v197
  %v230 = vunpack.c.l.b16 %v198
  %v231 = vunpack.c.l.b16 %v199
  %v232 = vunpack.c.l.b16 %v200
  %v233 = vunpack.c.l.b16 %v201
  %v234 = vunpack.c.l.b16 %v202
  %v235 = vunpack.c.l.b16 %v203
  %v236 = vpack.c.b16 %v221, %v220
  %v237 = vpack.c.b16 %v223, %v222
  %v238 = vpack.c.b16 %v225, %v224
  %v239 = vpack.c.b16 %v227, %v226
  %v240 = vpack.c.b16 %v229, %v228
  %v241 = vpack.c.b16 %v231, %v230
  %v242 = vpack.c.b16 %v233, %v232
  %v243 = vpack.c.b16 %v235, %v234
  %252 = vmatpush.bf16.msra.mxu0 %v243
  %253 = vmatpush.bf16.msra.mxu0 %v242
  %254 = vmatpush.bf16.msra.mxu0 %v241
  %255 = vmatpush.bf16.msra.mxu0 %v240
  %256 = vmatpush.bf16.msra.mxu0 %v239
  %257 = vmatpush.bf16.msra.mxu0 %v238
  %258 = vmatpush.bf16.msra.mxu0 %v237
  %259 = vmatpush.bf16.msra.mxu0 %v236
  %260 = vmatmul.bf16.gmra.mxu0 %v180
  %v261 = vpop.f32.mrf.mxu0
  %v262 = vadd.f32 0.0, %v261
  %v263 = vpop.f32.mrf.mxu0
  %v264 = vadd.f32 0.0, %v263
  %265 = vmatmul.bf16.gmra.mxu0 %v181
  %v266 = vpop.f32.mrf.mxu0
  %v267 = vadd.f32 0.0, %v266
  %v268 = vpop.f32.mrf.mxu0
  %v269 = vadd.f32 0.0, %v268
  %270 = vmatmul.bf16.gmra.mxu0 %v182
  %v271 = vpop.f32.mrf.mxu0
  %v272 = vadd.f32 0.0, %v271
  %v273 = vpop.f32.mrf.mxu0
  %v274 = vadd.f32 0.0, %v273
  %275 = vmatmul.bf16.gmra.mxu0 %v183
  %v276 = vpop.f32.mrf.mxu0
  %v277 = vadd.f32 0.0, %v276
  %v278 = vpop.f32.mrf.mxu0
  %v279 = vadd.f32 0.0, %v278
  %280 = vmatmul.bf16.gmra.mxu0 %v184
  %v281 = vpop.f32.mrf.mxu0
  %v282 = vadd.f32 0.0, %v281
  %v283 = vpop.f32.mrf.mxu0
  %v284 = vadd.f32 0.0, %v283
  %285 = vmatmul.bf16.gmra.mxu0 %v185
  %v286 = vpop.f32.mrf.mxu0
  %v287 = vadd.f32 0.0, %v286
  %v288 = vpop.f32.mrf.mxu0
  %v289 = vadd.f32 0.0, %v288
  %290 = vmatmul.bf16.gmra.mxu0 %v186
  %v291 = vpop.f32.mrf.mxu0
  %v292 = vadd.f32 0.0, %v291
  %v293 = vpop.f32.mrf.mxu0
  %v294 = vadd.f32 0.0, %v293
  %295 = vmatmul.bf16.gmra.mxu0 %v187
  %v296 = vpop.f32.mrf.mxu0
  %v297 = vadd.f32 0.0, %v296
  %v298 = vpop.f32.mrf.mxu0
  %v299 = vadd.f32 0.0, %v298
  %300 = vdwg.mxu0
  %v301 = vpack.c.bf16 %v262, %v262
  %v302 = vpack.c.bf16 %v264, %v264
  %v303 = vpack.c.bf16 %v267, %v267
  %v304 = vpack.c.bf16 %v269, %v269
  %v305 = vpack.c.bf16 %v272, %v272
  %v306 = vpack.c.bf16 %v274, %v274
  %v307 = vpack.c.bf16 %v277, %v277
  %v308 = vpack.c.bf16 %v279, %v279
  %v309 = vpack.c.bf16 %v282, %v282
  %v310 = vpack.c.bf16 %v284, %v284
  %v311 = vpack.c.bf16 %v287, %v287
  %v312 = vpack.c.bf16 %v289, %v289
  %v313 = vpack.c.bf16 %v292, %v292
  %v314 = vpack.c.bf16 %v294, %v294
  %v315 = vpack.c.bf16 %v297, %v297
  %v316 = vpack.c.bf16 %v299, %v299
  %v317 = vunpack.c.l.bf16 %v301
  %v318 = vunpack.c.l.bf16 %v302
  %v319 = vunpack.c.l.bf16 %v303
  %v320 = vunpack.c.l.bf16 %v304
  %v321 = vunpack.c.l.bf16 %v305
  %v322 = vunpack.c.l.bf16 %v306
  %v323 = vunpack.c.l.bf16 %v307
  %v324 = vunpack.c.l.bf16 %v308
  %v325 = vunpack.c.l.bf16 %v309
  %v326 = vunpack.c.l.bf16 %v310
  %v327 = vunpack.c.l.bf16 %v311
  %v328 = vunpack.c.l.bf16 %v312
  %v329 = vunpack.c.l.bf16 %v313
  %v330 = vunpack.c.l.bf16 %v314
  %v331 = vunpack.c.l.bf16 %v315
  %v332 = vunpack.c.l.bf16 %v316
  %v333 = vmax.f32 %v317, 0.0
  %v334 = vmax.f32 %v318, 0.0
  %v335 = vmax.f32 %v319, 0.0
  %v336 = vmax.f32 %v320, 0.0
  %v337 = vmax.f32 %v321, 0.0
  %v338 = vmax.f32 %v322, 0.0
  %v339 = vmax.f32 %v323, 0.0
  %v340 = vmax.f32 %v324, 0.0
  %v341 = vmax.f32 %v325, 0.0
  %v342 = vmax.f32 %v326, 0.0
  %v343 = vmax.f32 %v327, 0.0
  %v344 = vmax.f32 %v328, 0.0
  %v345 = vmax.f32 %v329, 0.0
  %v346 = vmax.f32 %v330, 0.0
  %v347 = vmax.f32 %v331, 0.0
  %v348 = vmax.f32 %v332, 0.0
  %v349 = vpack.c.bf16 %v334, %v333
  %v350 = vpack.c.bf16 %v336, %v335
  %v351 = vpack.c.bf16 %v338, %v337
  %v352 = vpack.c.bf16 %v340, %v339
  %v353 = vpack.c.bf16 %v342, %v341
  %v354 = vpack.c.bf16 %v344, %v343
  %v355 = vpack.c.bf16 %v346, %v345
  %v356 = vpack.c.bf16 %v348, %v347
  %v357 = vld [vmem:[%s3] sm:$0xf]
  %v358 = vld [vmem:[%s3 + $0x4] sm:$0xf]
  %v359 = vld [vmem:[%s3 + $0x8] sm:$0xf]
  %v360 = vld [vmem:[%s3 + $0xc] sm:$0xf]
  %v361 = vld [vmem:[%s3 + $0x10] sm:$0xf]
  %v362 = vld [vmem:[%s3 + $0x14] sm:$0xf]
  %v363 = vld [vmem:[%s3 + $0x18] sm:$0xf]
  %v364 = vld [vmem:[%s3 + $0x1c] sm:$0xf]
  %v365 = vld [vmem:[%s3 + $0x20] sm:$0xf]
  %v366 = vld [vmem:[%s3 + $0x24] sm:$0xf]
  %v367 = vld [vmem:[%s3 + $0x28] sm:$0xf]
  %v368 = vld [vmem:[%s3 + $0x2c] sm:$0xf]
  %v369 = vld [vmem:[%s3 + $0x30] sm:$0xf]
  %v370 = vld [vmem:[%s3 + $0x34] sm:$0xf]
  %v371 = vld [vmem:[%s3 + $0x38] sm:$0xf]
  %v372 = vld [vmem:[%s3 + $0x3c] sm:$0xf]
  %v389 = vunpack.c.l.b16 %v357
  %v390 = vunpack.c.l.b16 %v358
  %v391 = vunpack.c.l.b16 %v359
  %v392 = vunpack.c.l.b16 %v360
  %v393 = vunpack.c.l.b16 %v361
  %v394 = vunpack.c.l.b16 %v362
  %v395 = vunpack.c.l.b16 %v363
  %v396 = vunpack.c.l.b16 %v364
  %v397 = vunpack.c.l.b16 %v365
  %v398 = vunpack.c.l.b16 %v366
  %v399 = vunpack.c.l.b16 %v367
  %v400 = vunpack.c.l.b16 %v368
  %v401 = vunpack.c.l.b16 %v369
  %v402 = vunpack.c.l.b16 %v370
  %v403 = vunpack.c.l.b16 %v371
  %v404 = vunpack.c.l.b16 %v372
  %v405 = vpack.c.b16 %v390, %v389
  %v406 = vpack.c.b16 %v392, %v391
  %v407 = vpack.c.b16 %v394, %v393
  %v408 = vpack.c.b16 %v396, %v395
  %v409 = vpack.c.b16 %v398, %v397
  %v410 = vpack.c.b16 %v400, %v399
  %v411 = vpack.c.b16 %v402, %v401
  %v412 = vpack.c.b16 %v404, %v403
  %421 = vmatpush.bf16.msra.mxu0 %v412
  %422 = vmatpush.bf16.msra.mxu0 %v411
  %423 = vmatpush.bf16.msra.mxu0 %v410
  %424 = vmatpush.bf16.msra.mxu0 %v409
  %425 = vmatpush.bf16.msra.mxu0 %v408
  %426 = vmatpush.bf16.msra.mxu0 %v407
  %427 = vmatpush.bf16.msra.mxu0 %v406
  %428 = vmatpush.bf16.msra.mxu0 %v405
  %429 = vmatmul.bf16.gmra.mxu0 %v349
  %v430 = vpop.f32.mrf.mxu0
  %v431 = vadd.f32 0.0, %v430
  %v432 = vpop.f32.mrf.mxu0
  %v433 = vadd.f32 0.0, %v432
  %434 = vmatmul.bf16.gmra.mxu0 %v350
  %v435 = vpop.f32.mrf.mxu0
  %v436 = vadd.f32 0.0, %v435
  %v437 = vpop.f32.mrf.mxu0
  %v438 = vadd.f32 0.0, %v437
  %439 = vmatmul.bf16.gmra.mxu0 %v351
  %v440 = vpop.f32.mrf.mxu0
  %v441 = vadd.f32 0.0, %v440
  %v442 = vpop.f32.mrf.mxu0
  %v443 = vadd.f32 0.0, %v442
  %444 = vmatmul.bf16.gmra.mxu0 %v352
  %v445 = vpop.f32.mrf.mxu0
  %v446 = vadd.f32 0.0, %v445
  %v447 = vpop.f32.mrf.mxu0
  %v448 = vadd.f32 0.0, %v447
  %449 = vmatmul.bf16.gmra.mxu0 %v353
  %v450 = vpop.f32.mrf.mxu0
  %v451 = vadd.f32 0.0, %v450
  %v452 = vpop.f32.mrf.mxu0
  %v453 = vadd.f32 0.0, %v452
  %454 = vmatmul.bf16.gmra.mxu0 %v354
  %v455 = vpop.f32.mrf.mxu0
  %v456 = vadd.f32 0.0, %v455
  %v457 = vpop.f32.mrf.mxu0
  %v458 = vadd.f32 0.0, %v457
  %459 = vmatmul.bf16.gmra.mxu0 %v355
  %v460 = vpop.f32.mrf.mxu0
  %v461 = vadd.f32 0.0, %v460
  %v462 = vpop.f32.mrf.mxu0
  %v463 = vadd.f32 0.0, %v462
  %464 = vmatmul.bf16.gmra.mxu0 %v356
  %v465 = vpop.f32.mrf.mxu0
  %v466 = vadd.f32 0.0, %v465
  %v467 = vpop.f32.mrf.mxu0
  %v468 = vadd.f32 0.0, %v467
  %469 = vdwg.mxu0
  %vm470 = vcmask 130048
  %471 = vst.msk [vmem:[%s4] sm:$0xff] %vm470, %v431
  %472 = vst.msk [vmem:[%s4 + $0x8] sm:$0xff] %vm470, %v433
  %473 = vst.msk [vmem:[%s4 + $0x10] sm:$0xff] %vm470, %v436
  %474 = vst.msk [vmem:[%s4 + $0x18] sm:$0xff] %vm470, %v438
  %475 = vst.msk [vmem:[%s4 + $0x20] sm:$0xff] %vm470, %v441
  %476 = vst.msk [vmem:[%s4 + $0x28] sm:$0xff] %vm470, %v443
  %477 = vst.msk [vmem:[%s4 + $0x30] sm:$0xff] %vm470, %v446
  %478 = vst.msk [vmem:[%s4 + $0x38] sm:$0xff] %vm470, %v448
  %479 = vst.msk [vmem:[%s4 + $0x40] sm:$0xff] %vm470, %v451
  %480 = vst.msk [vmem:[%s4 + $0x48] sm:$0xff] %vm470, %v453
  %481 = vst.msk [vmem:[%s4 + $0x50] sm:$0xff] %vm470, %v456
  %482 = vst.msk [vmem:[%s4 + $0x58] sm:$0xff] %vm470, %v458
  %483 = vst.msk [vmem:[%s4 + $0x60] sm:$0xff] %vm470, %v461
  %484 = vst.msk [vmem:[%s4 + $0x68] sm:$0xff] %vm470, %v463
  %485 = vst.msk [vmem:[%s4 + $0x70] sm:$0xff] %vm470, %v466
  %486 = vst.msk [vmem:[%s4 + $0x78] sm:$0xff] %vm470, %v468
  // Predicated region
  $region18: #{tpu_custom_call.1} parent=0 // pred_check
    _
  $region19: #{tpu_custom_call.1} parent=0 // pred_check_branch
    %488 = sbr.rel (0) target = $region21
  $region20: #{tpu_custom_call.1} parent=0 // pred_region
    _
  $region21: #{tpu_custom_call.1} parent=0 // pred_fallthru
    _
  // Predicated region
  $region22: #{tpu_custom_call.1} parent=0 // pred_check
    _
  $region23: #{tpu_custom_call.1} parent=0 // pred_check_branch
    %490 = sbr.rel (0) target = $region25
  $region24: #{tpu_custom_call.1} parent=0 // pred_region
    _
  $region25: #{tpu_custom_call.1} parent=0 // pred_fallthru
    _

</llo_original>
